<compile_context>
chip_gen: v7x
topology: tpu7x:2x2x1
jax: 0.10.0
libtpu: 0.0.40
codegen_flags: <defaults>
</compile_context>

<pallas_src>
import numpy as np
import jax
import jax.numpy as jnp
from jax import lax
from jax.experimental import pallas as pl
from jax.experimental.pallas import tpu as pltpu

N_QUBITS = 4
Q_DEPTH = 6
Q_DELTA = 0.01
DIM = 2 ** N_QUBITS            # 16 basis states
IN_FEATURES = 512
OUT_FEATURES = 2


# -------------------- circuit matrices (parameter setup, plain numpy) --------

def _ry_layer_matrix(thetas):
    """Kron product of RY(theta_q); wire 0 is the most-significant bit (PennyLane)."""
    m = np.array([[1.0]])
    for th in thetas:
        c, s = np.cos(th / 2.0), np.sin(th / 2.0)
        m = np.kron(m, np.array([[c, -s], [s, c]]))
    return m


def _cnot_matrix(control, target, n=N_QUBITS):
    dim = 2 ** n
    m = np.zeros((dim, dim))
    for idx in range(dim):
        bits = [(idx >> (n - 1 - w)) & 1 for w in range(n)]
        if bits[control] == 1:
            bits[target] ^= 1
        new_idx = sum(b << (n - 1 - w) for w, b in enumerate(bits))
        m[new_idx, idx] = 1.0
    return m


def _entangling_matrix(n=N_QUBITS):
    """CNOT(0,1), CNOT(2,3) then CNOT(1,2) — same order as entangling_layer()."""
    m = np.eye(2 ** n)
    for i in range(0, n - 1, 2):
        m = _cnot_matrix(i, i + 1, n) @ m
    for i in range(1, n - 1, 2):
        m = _cnot_matrix(i, i + 1, n) @ m
    return m


def _fixed_circuit_matrix(q_params):
    """U = RY(w5) E RY(w4) E ... RY(w0) E  (parameter-only part of q_net)."""
    qw = np.asarray(q_params, dtype=np.float64).reshape(Q_DEPTH, N_QUBITS)
    e = _entangling_matrix()
    u = np.eye(DIM)
    for k in range(Q_DEPTH):
        u = _ry_layer_matrix(qw[k]) @ (e @ u)
    return u


def _bit_mask():
    """mask[q, idx] = bit of wire q (MSB = wire 0) in basis index idx."""
    mask = np.zeros((N_QUBITS, DIM))
    for q in range(N_QUBITS):
        for idx in range(DIM):
            mask[q, idx] = (idx >> (N_QUBITS - 1 - q)) & 1
    return mask


def _selector_matrices():
    """Per-qubit broadcast/select matrices so the product state is built with
    MXU matmuls:  factor_q = c0 @ A_q + c1 @ B_q,
    A_q[p, idx] = (p==q) * (1 - bit_q(idx)),  B_q[p, idx] = (p==q) * bit_q(idx).
    A_q / B_q for all q are stacked row-wise into [N_QUBITS*N_QUBITS, DIM]."""
    mask = _bit_mask()
    sel0 = np.zeros((N_QUBITS * N_QUBITS, DIM))
    sel1 = np.zeros((N_QUBITS * N_QUBITS, DIM))
    for q in range(N_QUBITS):
        sel0[q * N_QUBITS + q, :] = 1.0 - mask[q]
        sel1[q * N_QUBITS + q, :] = mask[q]
    return sel0, sel1


def _round_up(n, m):
    return ((n + m - 1) // m) * m


def _cdiv(a, b):
    return -(-a // b)


# -------------------------------- Pallas kernel ------------------------------

def quantumnet_kernel(x_ref, w1t_ref, b1_ref, sel0_ref, sel1_ref, ut_ref,
                      zw2_ref, b2_ref, o_ref):
    x = x_ref[...]                                                   # [BM, 512]

    # pre_net: Linear(512 -> 4); weight stored lane-dense as [4, 512], contract
    # x's feature axis against w1t's feature axis (A @ B^T form, native on MXU).
    pre = lax.dot_general(x, w1t_ref[...],
                          dimension_numbers=(((1,), (1,)), ((), ())),
                          preferred_element_type=jnp.float32) + b1_ref[...]
    q_in = jnp.tanh(pre) * (jnp.pi / 2.0)                            # [BM, 4]

    # H layer + RY(q_in) layer -> product state.  Per-qubit amplitudes:
    #   <0| = (cos(t/2) - sin(t/2)) / sqrt2 = cos(t/2 + pi/4)
    #   <1| = (cos(t/2) + sin(t/2)) / sqrt2 = sin(t/2 + pi/4)
    phase = 0.5 * q_in + (jnp.pi / 4.0)
    c0 = jnp.cos(phase)                                              # <0| component
    c1 = jnp.sin(phase)                                              # <1| component

    # Product state via per-qubit selector matmuls (no cross-lane broadcasts).
    state = None
    for q in range(N_QUBITS):
        lo, hi = q * N_QUBITS, (q + 1) * N_QUBITS                    # static slice
        factor = (jnp.dot(c0, sel0_ref[lo:hi, :], preferred_element_type=jnp.float32)
                  + jnp.dot(c1, sel1_ref[lo:hi, :], preferred_element_type=jnp.float32))
        state = factor if state is None else state * factor          # [BM, 16]

    # Fixed part of the circuit (6x entangler + RY(weights)): real 16x16 matrix.
    state = jnp.dot(state, ut_ref[...], preferred_element_type=jnp.float32)

    # <Z_q> reduction and post_net folded on host:  out = probs @ (Z @ W2) + b2.
    probs = state * state
    o_ref[...] = (jnp.dot(probs, zw2_ref[...], preferred_element_type=jnp.float32)
                  + b2_ref[...])


def quantumnet_forward(x, params, block_b=None):
    b = x.shape[0]
    if block_b is None:
        # Big tiles amortize the ~0.35 us per-grid-step overhead; cap at 1024 so
        # the x tile stays 2 MiB (4 MiB double-buffered) — comfortably inside the
        # default scoped-VMEM limit on v5e/v6e/v7x.  For ragged batches, split
        # into near-equal tiles instead of one full tile + one padding tile.
        max_block = 1024
        num_tiles = max(1, _cdiv(b, max_block))
        block_b = _round_up(_cdiv(b, num_tiles), 8)
    block_b = max(8, _round_up(block_b, 8))
    bp = _round_up(b, block_b)
    xp = jnp.pad(x.astype(jnp.float32), ((0, bp - b), (0, 0)))

    sel0_np, sel1_np = _selector_matrices()
    sel0 = jnp.asarray(sel0_np, jnp.float32)                         # [16, 16]
    sel1 = jnp.asarray(sel1_np, jnp.float32)                         # [16, 16]
    ut = jnp.asarray(np.asarray(params["u"]).T, jnp.float32)         # [16, 16] (U^T)

    # Fold PauliZ sign matrix and post_net weight: Z [16,4] @ W2 [4,2] -> [16,2].
    z_np = (1.0 - 2.0 * _bit_mask()).T                               # [16, 4], +-1
    zw2 = jnp.asarray(z_np @ np.asarray(params["w2"], np.float64), jnp.float32)

    # pre_net weight, lane-dense transposed layout [4, 512].
    w1t = jnp.asarray(np.asarray(params["w1"]).T, jnp.float32)

    out = pl.pallas_call(
        quantumnet_kernel,
        out_shape=jax.ShapeDtypeStruct((bp, OUT_FEATURES), jnp.float32),
        grid=(bp // block_b,),
        in_specs=[
            pl.BlockSpec((block_b, IN_FEATURES), lambda i: (i, 0)),          # x
            pl.BlockSpec((N_QUBITS, IN_FEATURES), lambda i: (0, 0)),         # W1^T
            pl.BlockSpec((1, N_QUBITS), lambda i: (0, 0)),                   # b1
            pl.BlockSpec((N_QUBITS * N_QUBITS, DIM), lambda i: (0, 0)),      # sel0
            pl.BlockSpec((N_QUBITS * N_QUBITS, DIM), lambda i: (0, 0)),      # sel1
            pl.BlockSpec((DIM, DIM), lambda i: (0, 0)),                      # U^T
            pl.BlockSpec((DIM, OUT_FEATURES), lambda i: (0, 0)),             # Z @ W2
            pl.BlockSpec((1, OUT_FEATURES), lambda i: (0, 0)),               # b2
        ],
        out_specs=pl.BlockSpec((block_b, OUT_FEATURES), lambda i: (i, 0)),
        compiler_params=pltpu.CompilerParams(dimension_semantics=("parallel",)),
    )(xp, w1t, params["b1"], sel0, sel1, ut, zw2, params["b2"])
    return out[:b]


# --------------------------- deterministic parameters ------------------------

def init_params(key):
    k1, k2, k3, k4, k5 = jax.random.split(key, 5)
    w1 = jax.random.normal(k1, (IN_FEATURES, N_QUBITS), jnp.float32) / np.sqrt(IN_FEATURES)
    b1 = 0.01 * jax.random.normal(k2, (1, N_QUBITS), jnp.float32)
    q_params = Q_DELTA * jax.random.normal(k3, (Q_DEPTH * N_QUBITS,), jnp.float32)
    w2 = jax.random.normal(k4, (N_QUBITS, OUT_FEATURES), jnp.float32) / np.sqrt(N_QUBITS)
    b2 = 0.01 * jax.random.normal(k5, (1, OUT_FEATURES), jnp.float32)
    u = _fixed_circuit_matrix(np.asarray(q_params))          # parameter-only preprocessing
    return dict(w1=w1, b1=b1, q_params=q_params, u=u, w2=w2, b2=b2)


# -------------------------- pure-numpy reference (f64) -----------------------

def reference_forward(x, params):
    x = np.asarray(x, np.float64)
    w1 = np.asarray(params["w1"], np.float64)
    b1 = np.asarray(params["b1"], np.float64).reshape(-1)
    w2 = np.asarray(params["w2"], np.float64)
    b2 = np.asarray(params["b2"], np.float64).reshape(-1)
    qw = np.asarray(params["q_params"], np.float64).reshape(Q_DEPTH, N_QUBITS)

    pre = x @ w1 + b1
    q_in = np.tanh(pre) * np.pi / 2.0

    e = _entangling_matrix()
    h = np.array([[1.0, 1.0], [1.0, -1.0]]) / np.sqrt(2.0)
    h_all = np.array([[1.0]])
    for _ in range(N_QUBITS):
        h_all = np.kron(h_all, h)
    mask = _bit_mask()

    q_outs = []
    for bi in range(x.shape[0]):
        psi = np.zeros(DIM); psi[0] = 1.0
        psi = h_all @ psi
        psi = _ry_layer_matrix(q_in[bi]) @ psi
        for k in range(Q_DEPTH):
            psi = e @ psi
            psi = _ry_layer_matrix(qw[k]) @ psi
        probs = psi ** 2
        q_outs.append([np.sum(probs * (1.0 - 2.0 * mask[q])) for q in range(N_QUBITS)])
    q_out = np.array(q_outs)
    return q_out @ w2 + b2


if __name__ == "__main__":
    key = jax.random.PRNGKey(0)
    pkey, xkey = jax.random.split(key)
    params = init_params(pkey)

    # Input features (e.g. ResNet-18 pooled features): [batch=2, 512]
    x = jax.random.normal(xkey, (2, IN_FEATURES), jnp.float32)

    out = quantumnet_forward(x, params)
    out = jax.block_until_ready(out)

    ref = reference_forward(x, params)
    np.testing.assert_allclose(np.asarray(out), ref, rtol=2e-4, atol=2e-4)
    print("KERNEL_OK")
</pallas_src>

<mosaic_0001>
module attributes {stable_mosaic.version = 11 : i64} {
  func.func @quantumnet_kernel(%arg0: i32, %arg1: memref<8x512xf32, #tpu.memory_space<vmem>>, %arg2: memref<4x512xf32, #tpu.memory_space<vmem>>, %arg3: memref<1x4xf32, #tpu.memory_space<vmem>>, %arg4: memref<16x16xf32, #tpu.memory_space<vmem>>, %arg5: memref<16x16xf32, #tpu.memory_space<vmem>>, %arg6: memref<16x16xf32, #tpu.memory_space<vmem>>, %arg7: memref<16x2xf32, #tpu.memory_space<vmem>>, %arg8: memref<1x2xf32, #tpu.memory_space<vmem>>, %arg9: memref<8x2xf32, #tpu.memory_space<vmem>>) attributes {dimension_semantics = [#tpu.dimension_semantics<parallel>], iteration_bounds = array<i64: 1>, scalar_prefetch = 0 : i64, scratch_operands = 0 : i64, tpu.core_type = #tpu.core_type<tc>, window_params = [{transform_indices = @transform_0, window_bounds = array<i64: 8, 512>}, {pipeline_mode = #tpu.pipeline_mode<synchronous>, transform_indices = @transform_1, window_bounds = array<i64: 4, 512>}, {pipeline_mode = #tpu.pipeline_mode<synchronous>, transform_indices = @transform_2, window_bounds = array<i64: 1, 4>}, {pipeline_mode = #tpu.pipeline_mode<synchronous>, transform_indices = @transform_3, window_bounds = array<i64: 16, 16>}, {pipeline_mode = #tpu.pipeline_mode<synchronous>, transform_indices = @transform_4, window_bounds = array<i64: 16, 16>}, {pipeline_mode = #tpu.pipeline_mode<synchronous>, transform_indices = @transform_5, window_bounds = array<i64: 16, 16>}, {pipeline_mode = #tpu.pipeline_mode<synchronous>, transform_indices = @transform_6, window_bounds = array<i64: 16, 2>}, {pipeline_mode = #tpu.pipeline_mode<synchronous>, transform_indices = @transform_7, window_bounds = array<i64: 1, 2>}, {transform_indices = @transform_8, window_bounds = array<i64: 8, 2>}]} {
    %c0 = arith.constant 0 : index
    %c0_0 = arith.constant 0 : index
    %0 = vector.load %arg1[%c0, %c0_0] : memref<8x512xf32, #tpu.memory_space<vmem>>, vector<8x512xf32>
    %c0_1 = arith.constant 0 : index
    %c0_2 = arith.constant 0 : index
    %1 = vector.load %arg2[%c0_1, %c0_2] : memref<4x512xf32, #tpu.memory_space<vmem>>, vector<4x512xf32>
    %cst = arith.constant dense<0.000000e+00> : vector<8x4xf32>
    %2 = tpu.matmul %0, %1, %cst {dimension_numbers = #tpu.dot_dimension_numbers<[1], [1], [0], [0], [0, 0, 1, 0], [], []>} : vector<8x512xf32>, vector<4x512xf32>, vector<8x4xf32> -> vector<8x4xf32>
    %c0_3 = arith.constant 0 : index
    %c0_4 = arith.constant 0 : index
    %3 = vector.load %arg3[%c0_3, %c0_4] : memref<1x4xf32, #tpu.memory_space<vmem>>, vector<1x4xf32>
    %4 = vector.broadcast %3 : vector<1x4xf32> to vector<8x4xf32>
    %5 = arith.addf %2, %4 : vector<8x4xf32>
    %6 = math.tanh %5 : vector<8x4xf32>
    %cst_5 = arith.constant 1.57079637 : f32
    %7 = vector.broadcast %cst_5 : f32 to vector<8x4xf32>
    %8 = arith.mulf %6, %7 : vector<8x4xf32>
    %cst_6 = arith.constant 5.000000e-01 : f32
    %9 = vector.broadcast %cst_6 : f32 to vector<8x4xf32>
    %10 = arith.mulf %9, %8 : vector<8x4xf32>
    %cst_7 = arith.constant 0.785398185 : f32
    %11 = vector.broadcast %cst_7 : f32 to vector<8x4xf32>
    %12 = arith.addf %10, %11 : vector<8x4xf32>
    %13 = math.cos %12 : vector<8x4xf32>
    %14 = math.sin %12 : vector<8x4xf32>
    %c0_8 = arith.constant 0 : index
    %c0_9 = arith.constant 0 : index
    %15 = vector.load %arg4[%c0_8, %c0_9] : memref<16x16xf32, #tpu.memory_space<vmem>>, vector<4x16xf32>
    %cst_10 = arith.constant dense<0.000000e+00> : vector<8x16xf32>
    %16 = tpu.matmul %13, %15, %cst_10 {dimension_numbers = #tpu.dot_dimension_numbers<[1], [0], [0], [1], [0, 0, 1, 1], [], []>} : vector<8x4xf32>, vector<4x16xf32>, vector<8x16xf32> -> vector<8x16xf32>
    %c0_11 = arith.constant 0 : index
    %c0_12 = arith.constant 0 : index
    %17 = vector.load %arg5[%c0_11, %c0_12] : memref<16x16xf32, #tpu.memory_space<vmem>>, vector<4x16xf32>
    %cst_13 = arith.constant dense<0.000000e+00> : vector<8x16xf32>
    %18 = tpu.matmul %14, %17, %cst_13 {dimension_numbers = #tpu.dot_dimension_numbers<[1], [0], [0], [1], [0, 0, 1, 1], [], []>} : vector<8x4xf32>, vector<4x16xf32>, vector<8x16xf32> -> vector<8x16xf32>
    %19 = arith.addf %16, %18 : vector<8x16xf32>
    %c4 = arith.constant 4 : index
    %c0_14 = arith.constant 0 : index
    %20 = vector.load %arg4[%c4, %c0_14] : memref<16x16xf32, #tpu.memory_space<vmem>>, vector<4x16xf32>
    %cst_15 = arith.constant dense<0.000000e+00> : vector<8x16xf32>
    %21 = tpu.matmul %13, %20, %cst_15 {dimension_numbers = #tpu.dot_dimension_numbers<[1], [0], [0], [1], [0, 0, 1, 1], [], []>} : vector<8x4xf32>, vector<4x16xf32>, vector<8x16xf32> -> vector<8x16xf32>
    %c4_16 = arith.constant 4 : index
    %c0_17 = arith.constant 0 : index
    %22 = vector.load %arg5[%c4_16, %c0_17] : memref<16x16xf32, #tpu.memory_space<vmem>>, vector<4x16xf32>
    %cst_18 = arith.constant dense<0.000000e+00> : vector<8x16xf32>
    %23 = tpu.matmul %14, %22, %cst_18 {dimension_numbers = #tpu.dot_dimension_numbers<[1], [0], [0], [1], [0, 0, 1, 1], [], []>} : vector<8x4xf32>, vector<4x16xf32>, vector<8x16xf32> -> vector<8x16xf32>
    %24 = arith.addf %21, %23 : vector<8x16xf32>
    %25 = arith.mulf %19, %24 : vector<8x16xf32>
    %c8 = arith.constant 8 : index
    %c0_19 = arith.constant 0 : index
    %26 = vector.load %arg4[%c8, %c0_19] : memref<16x16xf32, #tpu.memory_space<vmem>>, vector<4x16xf32>
    %cst_20 = arith.constant dense<0.000000e+00> : vector<8x16xf32>
    %27 = tpu.matmul %13, %26, %cst_20 {dimension_numbers = #tpu.dot_dimension_numbers<[1], [0], [0], [1], [0, 0, 1, 1], [], []>} : vector<8x4xf32>, vector<4x16xf32>, vector<8x16xf32> -> vector<8x16xf32>
    %c8_21 = arith.constant 8 : index
    %c0_22 = arith.constant 0 : index
    %28 = vector.load %arg5[%c8_21, %c0_22] : memref<16x16xf32, #tpu.memory_space<vmem>>, vector<4x16xf32>
    %cst_23 = arith.constant dense<0.000000e+00> : vector<8x16xf32>
    %29 = tpu.matmul %14, %28, %cst_23 {dimension_numbers = #tpu.dot_dimension_numbers<[1], [0], [0], [1], [0, 0, 1, 1], [], []>} : vector<8x4xf32>, vector<4x16xf32>, vector<8x16xf32> -> vector<8x16xf32>
    %30 = arith.addf %27, %29 : vector<8x16xf32>
    %31 = arith.mulf %25, %30 : vector<8x16xf32>
    %c12 = arith.constant 12 : index
    %c0_24 = arith.constant 0 : index
    %32 = vector.load %arg4[%c12, %c0_24] : memref<16x16xf32, #tpu.memory_space<vmem>>, vector<4x16xf32>
    %cst_25 = arith.constant dense<0.000000e+00> : vector<8x16xf32>
    %33 = tpu.matmul %13, %32, %cst_25 {dimension_numbers = #tpu.dot_dimension_numbers<[1], [0], [0], [1], [0, 0, 1, 1], [], []>} : vector<8x4xf32>, vector<4x16xf32>, vector<8x16xf32> -> vector<8x16xf32>
    %c12_26 = arith.constant 12 : index
    %c0_27 = arith.constant 0 : index
    %34 = vector.load %arg5[%c12_26, %c0_27] : memref<16x16xf32, #tpu.memory_space<vmem>>, vector<4x16xf32>
    %cst_28 = arith.constant dense<0.000000e+00> : vector<8x16xf32>
    %35 = tpu.matmul %14, %34, %cst_28 {dimension_numbers = #tpu.dot_dimension_numbers<[1], [0], [0], [1], [0, 0, 1, 1], [], []>} : vector<8x4xf32>, vector<4x16xf32>, vector<8x16xf32> -> vector<8x16xf32>
    %36 = arith.addf %33, %35 : vector<8x16xf32>
    %37 = arith.mulf %31, %36 : vector<8x16xf32>
    %c0_29 = arith.constant 0 : index
    %c0_30 = arith.constant 0 : index
    %38 = vector.load %arg6[%c0_29, %c0_30] : memref<16x16xf32, #tpu.memory_space<vmem>>, vector<16x16xf32>
    %cst_31 = arith.constant dense<0.000000e+00> : vector<8x16xf32>
    %39 = tpu.matmul %37, %38, %cst_31 {dimension_numbers = #tpu.dot_dimension_numbers<[1], [0], [0], [1], [0, 0, 1, 1], [], []>} : vector<8x16xf32>, vector<16x16xf32>, vector<8x16xf32> -> vector<8x16xf32>
    %40 = arith.mulf %39, %39 : vector<8x16xf32>
    %c0_32 = arith.constant 0 : index
    %c0_33 = arith.constant 0 : index
    %41 = vector.load %arg7[%c0_32, %c0_33] : memref<16x2xf32, #tpu.memory_space<vmem>>, vector<16x2xf32>
    %cst_34 = arith.constant dense<0.000000e+00> : vector<8x2xf32>
    %42 = tpu.matmul %40, %41, %cst_34 {dimension_numbers = #tpu.dot_dimension_numbers<[1], [0], [0], [1], [0, 0, 1, 1], [], []>} : vector<8x16xf32>, vector<16x2xf32>, vector<8x2xf32> -> vector<8x2xf32>
    %c0_35 = arith.constant 0 : index
    %c0_36 = arith.constant 0 : index
    %43 = vector.load %arg8[%c0_35, %c0_36] : memref<1x2xf32, #tpu.memory_space<vmem>>, vector<1x2xf32>
    %44 = vector.broadcast %43 : vector<1x2xf32> to vector<8x2xf32>
    %45 = arith.addf %42, %44 : vector<8x2xf32>
    %c0_37 = arith.constant 0 : index
    %c0_38 = arith.constant 0 : index
    %46 = vector.load %arg9[%c0_37, %c0_38] : memref<8x2xf32, #tpu.memory_space<vmem>>, vector<8x2xf32>
    tpu.vector_store %arg9[%c0_37, %c0_38], %45 {strides = array<i32>} : memref<8x2xf32, #tpu.memory_space<vmem>>, vector<8x2xf32>,
    return
  }
  func.func @transform_0(%arg0: i32) -> (i32, i32) {
    %c0_i32 = arith.constant 0 : i32
    %c0_i32_0 = arith.constant 0 : i32
    return %arg0, %c0_i32 : i32, i32
  }
  func.func @transform_1(%arg0: i32) -> (i32, i32) {
    %c0_i32 = arith.constant 0 : i32
    %c0_i32_0 = arith.constant 0 : i32
    %c0_i32_1 = arith.constant 0 : i32
    return %c0_i32, %c0_i32_0 : i32, i32
  }
  func.func @transform_2(%arg0: i32) -> (i32, i32) {
    %c0_i32 = arith.constant 0 : i32
    %c0_i32_0 = arith.constant 0 : i32
    %c0_i32_1 = arith.constant 0 : i32
    return %c0_i32, %c0_i32_0 : i32, i32
  }
  func.func @transform_3(%arg0: i32) -> (i32, i32) {
    %c0_i32 = arith.constant 0 : i32
    %c0_i32_0 = arith.constant 0 : i32
    %c0_i32_1 = arith.constant 0 : i32
    return %c0_i32, %c0_i32_0 : i32, i32
  }
  func.func @transform_4(%arg0: i32) -> (i32, i32) {
    %c0_i32 = arith.constant 0 : i32
    %c0_i32_0 = arith.constant 0 : i32
    %c0_i32_1 = arith.constant 0 : i32
    return %c0_i32, %c0_i32_0 : i32, i32
  }
  func.func @transform_5(%arg0: i32) -> (i32, i32) {
    %c0_i32 = arith.constant 0 : i32
    %c0_i32_0 = arith.constant 0 : i32
    %c0_i32_1 = arith.constant 0 : i32
    return %c0_i32, %c0_i32_0 : i32, i32
  }
  func.func @transform_6(%arg0: i32) -> (i32, i32) {
    %c0_i32 = arith.constant 0 : i32
    %c0_i32_0 = arith.constant 0 : i32
    %c0_i32_1 = arith.constant 0 : i32
    return %c0_i32, %c0_i32_0 : i32, i32
  }
  func.func @transform_7(%arg0: i32) -> (i32, i32) {
    %c0_i32 = arith.constant 0 : i32
    %c0_i32_0 = arith.constant 0 : i32
    %c0_i32_1 = arith.constant 0 : i32
    return %c0_i32, %c0_i32_0 : i32, i32
  }
  func.func @transform_8(%arg0: i32) -> (i32, i32) {
    %c0_i32 = arith.constant 0 : i32
    %c0_i32_0 = arith.constant 0 : i32
    return %arg0, %c0_i32 : i32, i32
  }
}

</mosaic_0001>

<llo_original>
// kernel: tpu_custom_call.1
$region0: #{tpu_custom_call.1}
  #allocation0 [shape = 'u32[]', space=smem, size = 0x4, offset = 0x4, fixed_abs, tag = 'smem constant byte address 0x4 - core index']
  #allocation1 [shape = 'u32[144,128]{1,0:T(1,128)}', space=vmem, size = 0x12000, scoped, tag = 'internal scratch']
  %s0 = inlined_call_operand.hbm [shape: f32[8,512], index: 0, kind: input, shape index: {}]
  %s1 = inlined_call_operand.vmem [shape: f32[4,512], index: 1, kind: input, shape index: {}]
  %s2 = inlined_call_operand.vmem [shape: f32[1,4], index: 2, kind: input, shape index: {}]
  %s3 = inlined_call_operand.hbm [shape: f32[16,16], index: 3, kind: input, shape index: {}]
  %s4 = inlined_call_operand.vmem [shape: f32[16,16], index: 4, kind: input, shape index: {}]
  %s5 = inlined_call_operand.hbm [shape: f32[16,16], index: 5, kind: input, shape index: {}]
  %s6 = inlined_call_operand.vmem [shape: f32[16,2], index: 6, kind: input, shape index: {}]
  %s7 = inlined_call_operand.vmem [shape: f32[1,2], index: 7, kind: input, shape index: {}]
  %s8 = inlined_call_operand.vmem [shape: f32[8,2], index: 8, kind: output, shape index: {}]
  %s9 = sld [smem:[#allocation0]]
  $region54: #{tpu_custom_call.1} parent=0
    _
  %s11 = ssub.s32 1, %s9
  %s12 = scalar_select 0, %s11, %s9
  $region1: #{tpu_custom_call.1} parent=0
    #allocation2 [shape = 'u8[16384]{0}', space=vmem, size = 0x4000, scoped, tag = 'input window, operand 0, single buffered']
    #allocation3 [shape = 's32[1]{0}', space=sflag, size = 0x4, scoped, tag = 'scoped memory for tpu_custom_call.1']
    #allocation4 [shape = 'u8[8192]{0}', space=vmem, size = 0x2000, scoped, tag = 'input window, operand 3, single buffered']
    #allocation5 [shape = 's32[1]{0}', space=sflag, size = 0x4, scoped, tag = 'scoped memory for tpu_custom_call.1']
    #allocation6 [shape = 'u8[8192]{0}', space=vmem, size = 0x2000, scoped, tag = 'input window, operand 5, single buffered']
    %13 = vsyncpa [#allocation3], 0
    %14 = vsyncpa [#allocation5], 0
    // Predicated region
    $region2: #{tpu_custom_call.1} parent=1 // pred_check
      _
    $region3: #{tpu_custom_call.1} parent=1 // pred_check_branch
      %16 = sbr.rel (0) target = $region5
    $region4: #{tpu_custom_call.1} parent=1 // pred_region
      %s18 = ssub.s32 512, 512
      %19 = vsyncadd [#allocation3], %s18
      %s21 = sshll.u32 [#allocation2], 4
      %s22 = int_to_ptr.vmem [resolvable:$true] %s21
      %24 = dma.hbm_to_vmem [thread:$0]  %s0, 512, %s22, [#allocation3]
    $region5: #{tpu_custom_call.1} parent=1 // pred_fallthru
      _
    // Predicated region
    $region6: #{tpu_custom_call.1} parent=1 // pred_check
      _
    $region7: #{tpu_custom_call.1} parent=1 // pred_check_branch
      %26 = sbr.rel (0) target = $region9
    $region8: #{tpu_custom_call.1} parent=1 // pred_region
      _
    $region9: #{tpu_custom_call.1} parent=1 // pred_fallthru
      _
    // Predicated region
    $region10: #{tpu_custom_call.1} parent=1 // pred_check
      _
    $region11: #{tpu_custom_call.1} parent=1 // pred_check_branch
      %28 = sbr.rel (0) target = $region13
    $region12: #{tpu_custom_call.1} parent=1 // pred_region
      _
    $region13: #{tpu_custom_call.1} parent=1 // pred_fallthru
      _
    // Predicated region
    $region14: #{tpu_custom_call.1} parent=1 // pred_check
      _
    $region15: #{tpu_custom_call.1} parent=1 // pred_check_branch
      %30 = sbr.rel (0) target = $region17
    $region16: #{tpu_custom_call.1} parent=1 // pred_region
      %s32 = ssub.s32 256, 256
      %33 = vsyncadd [#allocation5], %s32
      %s34 = sshll.u32 [#allocation4], 4
      %s35 = int_to_ptr.vmem [resolvable:$true] %s34
      %40 = dma.hbm_to_vmem [thread:$0]  %s3, 256, %s35, [#allocation5], 128, 128, 8
    $region17: #{tpu_custom_call.1} parent=1 // pred_fallthru
      _
    // Predicated region
    $region18: #{tpu_custom_call.1} parent=1 // pred_check
      _
    $region19: #{tpu_custom_call.1} parent=1 // pred_check_branch
      %42 = sbr.rel (0) target = $region21
    $region20: #{tpu_custom_call.1} parent=1 // pred_region
      _
    $region21: #{tpu_custom_call.1} parent=1 // pred_fallthru
      _
    // Predicated region
    $region22: #{tpu_custom_call.1} parent=1 // pred_check
      _
    $region23: #{tpu_custom_call.1} parent=1 // pred_check_branch
      %44 = sbr.rel (0) target = $region25
    $region24: #{tpu_custom_call.1} parent=1 // pred_region
      %s46 = ssub.s32 256, 256
      %47 = vsyncadd [#allocation5], %s46
      %s48 = sshll.u32 [#allocation6], 4
      %s49 = int_to_ptr.vmem [resolvable:$true] %s48
      %54 = dma.hbm_to_vmem [thread:$0]  %s5, 256, %s49, [#allocation5], 128, 128, 8
    $region25: #{tpu_custom_call.1} parent=1 // pred_fallthru
      _
    // Predicated region
    $region26: #{tpu_custom_call.1} parent=1 // pred_check
      _
    $region27: #{tpu_custom_call.1} parent=1 // pred_check_branch
      %56 = sbr.rel (0) target = $region29
    $region28: #{tpu_custom_call.1} parent=1 // pred_region
      _
    $region29: #{tpu_custom_call.1} parent=1 // pred_fallthru
      _
    // Predicated region
    $region30: #{tpu_custom_call.1} parent=1 // pred_check
      _
    $region31: #{tpu_custom_call.1} parent=1 // pred_check_branch
      %58 = sbr.rel (0) target = $region33
    $region32: #{tpu_custom_call.1} parent=1 // pred_region
      _
    $region33: #{tpu_custom_call.1} parent=1 // pred_fallthru
      _
    // Predicated region
    $region34: #{tpu_custom_call.1} parent=1 // pred_check
      _
    $region35: #{tpu_custom_call.1} parent=1 // pred_check_branch
      %60 = sbr.rel (0) target = $region37
    $region36: #{tpu_custom_call.1} parent=1 // pred_region
      %61 = dma.done [#allocation3], 512
    $region37: #{tpu_custom_call.1} parent=1 // pred_fallthru
      _
    // Predicated region
    $region38: #{tpu_custom_call.1} parent=1 // pred_check
      _
    $region39: #{tpu_custom_call.1} parent=1 // pred_check_branch
      %63 = sbr.rel (0) target = $region41
    $region40: #{tpu_custom_call.1} parent=1 // pred_region
      %64 = dma.done [#allocation5], 256
    $region41: #{tpu_custom_call.1} parent=1 // pred_fallthru
      _
    // Predicated region
    $region42: #{tpu_custom_call.1} parent=1 // pred_check
      _
    $region43: #{tpu_custom_call.1} parent=1 // pred_check_branch
      %66 = sbr.rel (0) target = $region45
    $region44: #{tpu_custom_call.1} parent=1 // pred_region
      %67 = dma.done [#allocation5], 256
    $region45: #{tpu_custom_call.1} parent=1 // pred_fallthru
      _
    %v68 = vld [vmem:[#allocation2] sm:$0xff]
    %v69 = vld [vmem:[#allocation2 + $0x8] sm:$0xff]
    %v70 = vld [vmem:[#allocation2 + $0x10] sm:$0xff]
    %v71 = vld [vmem:[#allocation2 + $0x18] sm:$0xff]
    %v72 = vld [vmem:[%s1] sm:$0xff]
    %v73 = vld [vmem:[%s1 + $0x8] sm:$0xff]
    %v74 = vld [vmem:[%s2] sm:$0x1]
    %v76 = vlaneseq
    %v77 = vshrl.u32 %v76, 7
    %v78 = vsub.s32 0, %v77
    %v79 = vrot.slane %v74, %v78
    %v83 = vcombine.high %v72, %v72
    %v84 = vcombine.high %v73, %v73
    %87 = vmatprep.subr.mxu0 %v83
    %88 = vmatpush1.xpose.msra.mxu0 %v72
    %89 = vmatprep.subr.mxu0 0.0
    %90 = vmatpush1.xpose.msra.mxu0 0.0
    %91 = vmatprep.subr.mxu0 0.0
    %92 = vmatpush1.xpose.msra.mxu0 0.0
    %93 = vmatprep.subr.mxu0 0.0
    %94 = vmatpush1.xpose.msra.mxu0 0.0
    %95 = vmatprep.subr.mxu0 0.0
    %96 = vmatpush1.xpose.msra.mxu0 0.0
    %97 = vmatprep.subr.mxu0 0.0
    %98 = vmatpush1.xpose.msra.mxu0 0.0
    %99 = vmatprep.subr.mxu0 0.0
    %100 = vmatpush1.xpose.msra.mxu0 0.0
    %101 = vmatprep.subr.mxu0 0.0
    %102 = vmatpush1.xpose.msra.mxu0 0.0
    %103 = vmatprep.subr.mxu0 0.0
    %104 = vmatpush1.xpose.msra.mxu0 0.0
    %105 = vmatprep.subr.mxu0 0.0
    %106 = vmatpush1.xpose.msra.mxu0 0.0
    %107 = vmatprep.subr.mxu0 0.0
    %108 = vmatpush1.xpose.msra.mxu0 0.0
    %109 = vmatprep.subr.mxu0 0.0
    %110 = vmatpush1.xpose.msra.mxu0 0.0
    %111 = vmatprep.subr.mxu0 0.0
    %112 = vmatpush1.xpose.msra.mxu0 0.0
    %113 = vmatprep.subr.mxu0 0.0
    %114 = vmatpush1.xpose.msra.mxu0 0.0
    %115 = vmatprep.subr.mxu0 0.0
    %116 = vmatpush1.xpose.msra.mxu0 0.0
    %117 = vmatprep.subr.mxu0 0.0
    %118 = vmatpush1.xpose.msra.mxu0 0.0
    %119 = vmatprep.subr.mxu0 0.0
    %120 = vmatpush1.xpose.msra.mxu0 0.0
    %121 = vmatprep.subr.mxu0 0.0
    %122 = vmatpush1.xpose.msra.mxu0 0.0
    %123 = vmatprep.subr.mxu0 0.0
    %124 = vmatpush1.xpose.msra.mxu0 0.0
    %125 = vmatprep.subr.mxu0 0.0
    %126 = vmatpush1.xpose.msra.mxu0 0.0
    %127 = vmatprep.subr.mxu0 0.0
    %128 = vmatpush1.xpose.msra.mxu0 0.0
    %129 = vmatprep.subr.mxu0 0.0
    %130 = vmatpush1.xpose.msra.mxu0 0.0
    %131 = vmatprep.subr.mxu0 0.0
    %132 = vmatpush1.xpose.msra.mxu0 0.0
    %133 = vmatprep.subr.mxu0 0.0
    %134 = vmatpush1.xpose.msra.mxu0 0.0
    %135 = vmatprep.subr.mxu0 0.0
    %136 = vmatpush1.xpose.msra.mxu0 0.0
    %137 = vmatprep.subr.mxu0 0.0
    %138 = vmatpush1.xpose.msra.mxu0 0.0
    %139 = vmatprep.subr.mxu0 0.0
    %140 = vmatpush1.xpose.msra.mxu0 0.0
    %141 = vmatprep.subr.mxu0 0.0
    %142 = vmatpush1.xpose.msra.mxu0 0.0
    %143 = vmatprep.subr.mxu0 0.0
    %144 = vmatpush1.xpose.msra.mxu0 0.0
    %145 = vmatprep.subr.mxu0 0.0
    %146 = vmatpush1.xpose.msra.mxu0 0.0
    %147 = vmatprep.subr.mxu0 0.0
    %148 = vmatpush1.xpose.msra.mxu0 0.0
    %149 = vmatprep.subr.mxu0 0.0
    %150 = vmatpush1.xpose.msra.mxu0 0.0
    %151 = vmatprep.mubr.f32.mxu0 %v69
    %152 = vmatmul.mubr.f32.gmra.mrb[0].mxu0 %v68
    %v153 = vpop.f32.mrb[0].mxu0
    %v154 = vadd.f32 %v79, %v153
    %v155 = vpop.f32.mrb[0].mxu0
    %156 = vdwg.mxu0
    %157 = vmatprep.subr.mxu0 %v84
    %158 = vmatpush1.xpose.msra.mxu0 %v73
    %159 = vmatprep.subr.mxu0 0.0
    %160 = vmatpush1.xpose.msra.mxu0 0.0
    %161 = vmatprep.subr.mxu0 0.0
    %162 = vmatpush1.xpose.msra.mxu0 0.0
    %163 = vmatprep.subr.mxu0 0.0
    %164 = vmatpush1.xpose.msra.mxu0 0.0
    %165 = vmatprep.subr.mxu0 0.0
    %166 = vmatpush1.xpose.msra.mxu0 0.0
    %167 = vmatprep.subr.mxu0 0.0
    %168 = vmatpush1.xpose.msra.mxu0 0.0
    %169 = vmatprep.subr.mxu0 0.0
    %170 = vmatpush1.xpose.msra.mxu0 0.0
    %171 = vmatprep.subr.mxu0 0.0
    %172 = vmatpush1.xpose.msra.mxu0 0.0
    %173 = vmatprep.subr.mxu0 0.0
    %174 = vmatpush1.xpose.msra.mxu0 0.0
    %175 = vmatprep.subr.mxu0 0.0
    %176 = vmatpush1.xpose.msra.mxu0 0.0
    %177 = vmatprep.subr.mxu0 0.0
    %178 = vmatpush1.xpose.msra.mxu0 0.0
    %179 = vmatprep.subr.mxu0 0.0
    %180 = vmatpush1.xpose.msra.mxu0 0.0
    %181 = vmatprep.subr.mxu0 0.0
    %182 = vmatpush1.xpose.msra.mxu0 0.0
    %183 = vmatprep.subr.mxu0 0.0
    %184 = vmatpush1.xpose.msra.mxu0 0.0
    %185 = vmatprep.subr.mxu0 0.0
    %186 = vmatpush1.xpose.msra.mxu0 0.0
    %187 = vmatprep.subr.mxu0 0.0
    %188 = vmatpush1.xpose.msra.mxu0 0.0
    %189 = vmatprep.subr.mxu0 0.0
    %190 = vmatpush1.xpose.msra.mxu0 0.0
    %191 = vmatprep.subr.mxu0 0.0
    %192 = vmatpush1.xpose.msra.mxu0 0.0
    %193 = vmatprep.subr.mxu0 0.0
    %194 = vmatpush1.xpose.msra.mxu0 0.0
    %195 = vmatprep.subr.mxu0 0.0
    %196 = vmatpush1.xpose.msra.mxu0 0.0
    %197 = vmatprep.subr.mxu0 0.0
    %198 = vmatpush1.xpose.msra.mxu0 0.0
    %199 = vmatprep.subr.mxu0 0.0
    %200 = vmatpush1.xpose.msra.mxu0 0.0
    %201 = vmatprep.subr.mxu0 0.0
    %202 = vmatpush1.xpose.msra.mxu0 0.0
    %203 = vmatprep.subr.mxu0 0.0
    %204 = vmatpush1.xpose.msra.mxu0 0.0
    %205 = vmatprep.subr.mxu0 0.0
    %206 = vmatpush1.xpose.msra.mxu0 0.0
    %207 = vmatprep.subr.mxu0 0.0
    %208 = vmatpush1.xpose.msra.mxu0 0.0
    %209 = vmatprep.subr.mxu0 0.0
    %210 = vmatpush1.xpose.msra.mxu0 0.0
    %211 = vmatprep.subr.mxu0 0.0
    %212 = vmatpush1.xpose.msra.mxu0 0.0
    %213 = vmatprep.subr.mxu0 0.0
    %214 = vmatpush1.xpose.msra.mxu0 0.0
    %215 = vmatprep.subr.mxu0 0.0
    %216 = vmatpush1.xpose.msra.mxu0 0.0
    %217 = vmatprep.subr.mxu0 0.0
    %218 = vmatpush1.xpose.msra.mxu0 0.0
    %219 = vmatprep.subr.mxu0 0.0
    %220 = vmatpush1.xpose.msra.mxu0 0.0
    %221 = vmatprep.mubr.f32.mxu0 %v71
    %222 = vmatmul.mubr.f32.gmra.mrb[0].mxu0 %v70
    %v223 = vpop.f32.mrb[0].mxu0
    %v224 = vadd.f32 %v154, %v223
    %v225 = vpop.f32.mrb[0].mxu0
    %226 = vdwg.mxu0
    %v227 = vtanh.pop %v224
    %v228 = vmul.f32 %v227, 1.5707964
    %v229 = vmul.f32 %v228, 0.5
    %v230 = vadd.f32 %v229, 0.7853982
    %v231 = vand.u32 2147483647, %v230
    %vm232 = vcmp.le.f32.partialorder %v231, 0.7853982
    %vm233 = vcmp.lt.s32.totalorder %v230, 0
    %v234 = vand.u32 %v230, 2139095040
    %v235 = vshrl.u32 %v234, 23
    %v236 = vsub.s32 %v235, 127
    %v237 = vand.u32 2147483647, %v230
    %v238 = vand.u32 %v237, 8388607
    %v239 = vor.u32 %v238, 8388608
    %v240 = vsub.s32 0, %v239
    %v241 = vadd.s32 %v236, 1
    %vm242 = vcmp.gt.s32.totalorder %v241, 0
    %v243 = vsel %vm242, %v241, 0
    %v244 = vshrl.u32 %v243, 5
    %v245 = vand.u32 %v243, 31
    %v246 = vsub.s32 32, %v245
    %v247 = vshrl.u32 683565275, %v246
    %v248 = vshll.u32 683565275, %v245
    %v249 = vshrl.u32 2475754826, %v246
    %v250 = vor.u32 %v248, %v249
    %v251 = vshll.u32 2475754826, %v245
    %v252 = vshrl.u32 2131351028, %v246
    %v253 = vor.u32 %v251, %v252
    %v254 = vshll.u32 2131351028, %v245
    %v255 = vshrl.u32 2102212464, %v246
    %v256 = vor.u32 %v254, %v255
    %v257 = vshll.u32 2102212464, %v245
    %v258 = vshrl.u32 920167782, %v246
    %v259 = vor.u32 %v257, %v258
    %v260 = vshll.u32 920167782, %v245
    %v261 = vshrl.u32 1326507024, %v246
    %v262 = vor.u32 %v260, %v261
    %vm263 = vcmp.lt.s32.totalorder %v244, 1
    %vm264 = vcmp.lt.s32.totalorder %v244, 2
    %vm265 = vcmp.lt.s32.totalorder %v244, 3
    %vm266 = vcmp.lt.s32.totalorder %v244, 4
    %v267 = vsel %vm263, %v247, %v250
    %v268 = vsel %vm266, %v256, 2102212464
    %v269 = vsel %vm265, %v253, %v268
    %v270 = vsel %vm264, %v267, %v269
    %v271 = vsel %vm263, %v250, %v253
    %v272 = vsel %vm266, %v259, 920167782
    %v273 = vsel %vm265, %v256, %v272
    %v274 = vsel %vm264, %v271, %v273
    %v275 = vsel %vm263, %v253, %v256
    %v276 = vsel %vm266, %v262, 1326507024
    %v277 = vsel %vm265, %v259, %v276
    %v278 = vsel %vm264, %v275, %v277
    %v279 = vshll.u32 %v239, 8
    %v280 = vmul.u32.u64.compose %v279, %v278
    %v281 = vextract.low.u32 %v280
    %v282 = vextract.high.u32 %v280
    %v283 = vmul.u32.u64.compose %v279, %v274
    %v284 = vextract.low.u32 %v283
    %v285 = vextract.high.u32 %v283
    %v286 = vmul.u32 %v279, %v270
    %v287 = vadd.s32 %v282, %v284
    %vm288 = vc.u32 %v282, %v284
    %v289 = vadd.s32 %v285, 1
    %v290 = vsel %vm288, %v289, %v285
    %v291 = vadd.s32 %v286, %v290
    %v292 = vadd.s32 %v291, 536870912
    %v293 = vshrl.u32 %v292, 30
    %v294 = vshll.u32 %v293, 30
    %v295 = vsub.s32 %v291, %v294
    %vm296 = vcmp.lt.s32.totalorder %v295, 0
    %v297 = vsub.s32 0, %v295
    %v298 = vsel %vm296, %v297, %v295
    %v299 = vclz %v298
    %v300 = vsub.s32 %v299, 2
    %vm301 = vcmp.gt.s32.totalorder 0, %v300
    %v302 = vsel %vm301, 0, %v300
    %v303 = vsub.s32 32, %v302
    %v304 = vshll.u32 %v295, %v302
    %v305 = vshrl.u32 %v287, %v303
    %v306 = vor.u32 %v304, %v305
    %v307 = vsub.s32 4294967266, %v302
    %v308 = vadd.s32 %v307, 127
    %v309 = vshll.u32 %v308, 23
    %v310 = vor.u32 4788187, %v309
    %v311 = vand.u32 2147483647, %v310
    %v313 = vcvt.s32.f32 %v306
    %v314 = vmul.f32 %v313, %v311
    %v315 = vxor.u32 %v314, 2147483648
    %v316 = vsel %vm233, %v315, %v314
    %v317 = vsub.s32 4, %v293
    %v318 = vsel %vm233, %v317, %v293
    %v319 = vsel %vm232, %v230, %v316
    %v320 = vsel %vm232, 0, %v318
    %v321 = vcosq.f32.pop %v319
    %v322 = vsinq.f32.pop %v319
    %vm323 = vweird.f32 %v230
    %v324 = vand.u32 %v320, 3
    %vm325 = vcmp.lt.s32.totalorder %v324, 2
    %vm326 = vcmp.eq.s32.totalorder %v324, 0
    %v327 = vxor.u32 %v322, 2147483648
    %v328 = vsel %vm326, %v321, %v327
    %vm329 = vcmp.eq.s32.totalorder %v324, 2
    %v330 = vxor.u32 %v321, 2147483648
    %v331 = vsel %vm329, %v330, %v322
    %v332 = vsel %vm325, %v328, %v331
    %v333 = vsel %vm323, nan, %v332
    %v334 = vand.u32 2147483647, %v230
    %vm335 = vcmp.le.f32.partialorder %v334, 0.7853982
    %vm336 = vcmp.lt.s32.totalorder %v230, 0
    %v337 = vand.u32 %v230, 2139095040
    %v338 = vshrl.u32 %v337, 23
    %v339 = vsub.s32 %v338, 127
    %v340 = vand.u32 2147483647, %v230
    %v341 = vand.u32 %v340, 8388607
    %v342 = vor.u32 %v341, 8388608
    %v343 = vsub.s32 0, %v342
    %v344 = vadd.s32 %v339, 1
    %vm345 = vcmp.gt.s32.totalorder %v344, 0
    %v346 = vsel %vm345, %v344, 0
    %v347 = vshrl.u32 %v346, 5
    %v348 = vand.u32 %v346, 31
    %v349 = vsub.s32 32, %v348
    %v350 = vshrl.u32 683565275, %v349
    %v351 = vshll.u32 683565275, %v348
    %v352 = vshrl.u32 2475754826, %v349
    %v353 = vor.u32 %v351, %v352
    %v354 = vshll.u32 2475754826, %v348
    %v355 = vshrl.u32 2131351028, %v349
    %v356 = vor.u32 %v354, %v355
    %v357 = vshll.u32 2131351028, %v348
    %v358 = vshrl.u32 2102212464, %v349
    %v359 = vor.u32 %v357, %v358
    %v360 = vshll.u32 2102212464, %v348
    %v361 = vshrl.u32 920167782, %v349
    %v362 = vor.u32 %v360, %v361
    %v363 = vshll.u32 920167782, %v348
    %v364 = vshrl.u32 1326507024, %v349
    %v365 = vor.u32 %v363, %v364
    %vm366 = vcmp.lt.s32.totalorder %v347, 1
    %vm367 = vcmp.lt.s32.totalorder %v347, 2
    %vm368 = vcmp.lt.s32.totalorder %v347, 3
    %vm369 = vcmp.lt.s32.totalorder %v347, 4
    %v370 = vsel %vm366, %v350, %v353
    %v371 = vsel %vm369, %v359, 2102212464
    %v372 = vsel %vm368, %v356, %v371
    %v373 = vsel %vm367, %v370, %v372
    %v374 = vsel %vm366, %v353, %v356
    %v375 = vsel %vm369, %v362, 920167782
    %v376 = vsel %vm368, %v359, %v375
    %v377 = vsel %vm367, %v374, %v376
    %v378 = vsel %vm366, %v356, %v359
    %v379 = vsel %vm369, %v365, 1326507024
    %v380 = vsel %vm368, %v362, %v379
    %v381 = vsel %vm367, %v378, %v380
    %v382 = vshll.u32 %v342, 8
    %v383 = vmul.u32.u64.compose %v382, %v381
    %v384 = vextract.low.u32 %v383
    %v385 = vextract.high.u32 %v383
    %v386 = vmul.u32.u64.compose %v382, %v377
    %v387 = vextract.low.u32 %v386
    %v388 = vextract.high.u32 %v386
    %v389 = vmul.u32 %v382, %v373
    %v390 = vadd.s32 %v385, %v387
    %vm391 = vc.u32 %v385, %v387
    %v392 = vadd.s32 %v388, 1
    %v393 = vsel %vm391, %v392, %v388
    %v394 = vadd.s32 %v389, %v393
    %v395 = vadd.s32 %v394, 536870912
    %v396 = vshrl.u32 %v395, 30
    %v397 = vshll.u32 %v396, 30
    %v398 = vsub.s32 %v394, %v397
    %vm399 = vcmp.lt.s32.totalorder %v398, 0
    %v400 = vsub.s32 0, %v398
    %v401 = vsel %vm399, %v400, %v398
    %v402 = vclz %v401
    %v403 = vsub.s32 %v402, 2
    %vm404 = vcmp.gt.s32.totalorder 0, %v403
    %v405 = vsel %vm404, 0, %v403
    %v406 = vsub.s32 32, %v405
    %v407 = vshll.u32 %v398, %v405
    %v408 = vshrl.u32 %v390, %v406
    %v409 = vor.u32 %v407, %v408
    %v410 = vsub.s32 4294967266, %v405
    %v411 = vadd.s32 %v410, 127
    %v412 = vshll.u32 %v411, 23
    %v413 = vor.u32 4788187, %v412
    %v414 = vand.u32 2147483647, %v413
    %v416 = vcvt.s32.f32 %v409
    %v417 = vmul.f32 %v416, %v414
    %v418 = vxor.u32 %v417, 2147483648
    %v419 = vsel %vm336, %v418, %v417
    %v420 = vsub.s32 4, %v396
    %v421 = vsel %vm336, %v420, %v396
    %v422 = vsel %vm335, %v230, %v419
    %v423 = vsel %vm335, 0, %v421
    %v424 = vcosq.f32.pop %v422
    %v425 = vsinq.f32.pop %v422
    %vm426 = vweird.f32 %v230
    %v427 = vadd.s32 %v423, 3
    %v428 = vand.u32 %v427, 3
    %vm429 = vcmp.lt.s32.totalorder %v428, 2
    %vm430 = vcmp.eq.s32.totalorder %v428, 0
    %v431 = vxor.u32 %v425, 2147483648
    %v432 = vsel %vm430, %v424, %v431
    %vm433 = vcmp.eq.s32.totalorder %v428, 2
    %v434 = vxor.u32 %v424, 2147483648
    %v435 = vsel %vm433, %v434, %v425
    %v436 = vsel %vm429, %v432, %v435
    %v437 = vsel %vm426, nan, %v436
    %v438 = vld [vmem:[#allocation4] sm:$0xf]
    %v439 = vld [vmem:[%s4] sm:$0xf]
    %vm440 = vcmask 31744
    %v442 = vsel %vm440, %v437, 0
    %vm444 = vcmask 1043456
    %v446 = vsel %vm444, %v439, 0
    %448 = vmatprep.subr.mxu0 0.0
    %449 = vmatpush1.msra.mxu0 %v446
    %450 = vmatprep.subr.mxu0 0.0
    %451 = vmatpush1.msra.mxu0 0.0
    %452 = vmatprep.subr.mxu0 0.0
    %453 = vmatpush1.msra.mxu0 0.0
    %454 = vmatprep.subr.mxu0 0.0
    %455 = vmatpush1.msra.mxu0 0.0
    %456 = vmatprep.subr.mxu0 0.0
    %457 = vmatpush1.msra.mxu0 0.0
    %458 = vmatprep.subr.mxu0 0.0
    %459 = vmatpush1.msra.mxu0 0.0
    %460 = vmatprep.subr.mxu0 0.0
    %461 = vmatpush1.msra.mxu0 0.0
    %462 = vmatprep.subr.mxu0 0.0
    %463 = vmatpush1.msra.mxu0 0.0
    %464 = vmatprep.subr.mxu0 0.0
    %465 = vmatpush1.msra.mxu0 0.0
    %466 = vmatprep.subr.mxu0 0.0
    %467 = vmatpush1.msra.mxu0 0.0
    %468 = vmatprep.subr.mxu0 0.0
    %469 = vmatpush1.msra.mxu0 0.0
    %470 = vmatprep.subr.mxu0 0.0
    %471 = vmatpush1.msra.mxu0 0.0
    %472 = vmatprep.subr.mxu0 0.0
    %473 = vmatpush1.msra.mxu0 0.0
    %474 = vmatprep.subr.mxu0 0.0
    %475 = vmatpush1.msra.mxu0 0.0
    %476 = vmatprep.subr.mxu0 0.0
    %477 = vmatpush1.msra.mxu0 0.0
    %478 = vmatprep.subr.mxu0 0.0
    %479 = vmatpush1.msra.mxu0 0.0
    %480 = vmatprep.subr.mxu0 0.0
    %481 = vmatpush1.msra.mxu0 0.0
    %482 = vmatprep.subr.mxu0 0.0
    %483 = vmatpush1.msra.mxu0 0.0
    %484 = vmatprep.subr.mxu0 0.0
    %485 = vmatpush1.msra.mxu0 0.0
    %486 = vmatprep.subr.mxu0 0.0
    %487 = vmatpush1.msra.mxu0 0.0
    %488 = vmatprep.subr.mxu0 0.0
    %489 = vmatpush1.msra.mxu0 0.0
    %490 = vmatprep.subr.mxu0 0.0
    %491 = vmatpush1.msra.mxu0 0.0
    %492 = vmatprep.subr.mxu0 0.0
    %493 = vmatpush1.msra.mxu0 0.0
    %494 = vmatprep.subr.mxu0 0.0
    %495 = vmatpush1.msra.mxu0 0.0
    %496 = vmatprep.subr.mxu0 0.0
    %497 = vmatpush1.msra.mxu0 0.0
    %498 = vmatprep.subr.mxu0 0.0
    %499 = vmatpush1.msra.mxu0 0.0
    %500 = vmatprep.subr.mxu0 0.0
    %501 = vmatpush1.msra.mxu0 0.0
    %502 = vmatprep.subr.mxu0 0.0
    %503 = vmatpush1.msra.mxu0 0.0
    %504 = vmatprep.subr.mxu0 0.0
    %505 = vmatpush1.msra.mxu0 0.0
    %506 = vmatprep.subr.mxu0 0.0
    %507 = vmatpush1.msra.mxu0 0.0
    %508 = vmatprep.subr.mxu0 0.0
    %509 = vmatpush1.msra.mxu0 0.0
    %510 = vmatprep.subr.mxu0 0.0
    %511 = vmatpush1.msra.mxu0 0.0
    %512 = vmatprep.mubr.f32.mxu0 0.0
    %513 = vmatmul.mubr.f32.gmra.mrb[0].mxu0 %v442
    %v514 = vpop.f32.mrb[0].mxu0
    %v515 = vadd.f32 0.0, %v514
    %v516 = vpop.f32.mrb[0].mxu0
    %517 = vdwg.mxu0
    %v519 = vsel %vm440, %v333, 0
    %v522 = vsel %vm444, %v438, 0
    %524 = vmatprep.subr.mxu0 0.0
    %525 = vmatpush1.msra.mxu0 %v522
    %526 = vmatprep.subr.mxu0 0.0
    %527 = vmatpush1.msra.mxu0 0.0
    %528 = vmatprep.subr.mxu0 0.0
    %529 = vmatpush1.msra.mxu0 0.0
    %530 = vmatprep.subr.mxu0 0.0
    %531 = vmatpush1.msra.mxu0 0.0
    %532 = vmatprep.subr.mxu0 0.0
    %533 = vmatpush1.msra.mxu0 0.0
    %534 = vmatprep.subr.mxu0 0.0
    %535 = vmatpush1.msra.mxu0 0.0
    %536 = vmatprep.subr.mxu0 0.0
    %537 = vmatpush1.msra.mxu0 0.0
    %538 = vmatprep.subr.mxu0 0.0
    %539 = vmatpush1.msra.mxu0 0.0
    %540 = vmatprep.subr.mxu0 0.0
    %541 = vmatpush1.msra.mxu0 0.0
    %542 = vmatprep.subr.mxu0 0.0
    %543 = vmatpush1.msra.mxu0 0.0
    %544 = vmatprep.subr.mxu0 0.0
    %545 = vmatpush1.msra.mxu0 0.0
    %546 = vmatprep.subr.mxu0 0.0
    %547 = vmatpush1.msra.mxu0 0.0
    %548 = vmatprep.subr.mxu0 0.0
    %549 = vmatpush1.msra.mxu0 0.0
    %550 = vmatprep.subr.mxu0 0.0
    %551 = vmatpush1.msra.mxu0 0.0
    %552 = vmatprep.subr.mxu0 0.0
    %553 = vmatpush1.msra.mxu0 0.0
    %554 = vmatprep.subr.mxu0 0.0
    %555 = vmatpush1.msra.mxu0 0.0
    %556 = vmatprep.subr.mxu0 0.0
    %557 = vmatpush1.msra.mxu0 0.0
    %558 = vmatprep.subr.mxu0 0.0
    %559 = vmatpush1.msra.mxu0 0.0
    %560 = vmatprep.subr.mxu0 0.0
    %561 = vmatpush1.msra.mxu0 0.0
    %562 = vmatprep.subr.mxu0 0.0
    %563 = vmatpush1.msra.mxu0 0.0
    %564 = vmatprep.subr.mxu0 0.0
    %565 = vmatpush1.msra.mxu0 0.0
    %566 = vmatprep.subr.mxu0 0.0
    %567 = vmatpush1.msra.mxu0 0.0
    %568 = vmatprep.subr.mxu0 0.0
    %569 = vmatpush1.msra.mxu0 0.0
    %570 = vmatprep.subr.mxu0 0.0
    %571 = vmatpush1.msra.mxu0 0.0
    %572 = vmatprep.subr.mxu0 0.0
    %573 = vmatpush1.msra.mxu0 0.0
    %574 = vmatprep.subr.mxu0 0.0
    %575 = vmatpush1.msra.mxu0 0.0
    %576 = vmatprep.subr.mxu0 0.0
    %577 = vmatpush1.msra.mxu0 0.0
    %578 = vmatprep.subr.mxu0 0.0
    %579 = vmatpush1.msra.mxu0 0.0
    %580 = vmatprep.subr.mxu0 0.0
    %581 = vmatpush1.msra.mxu0 0.0
    %582 = vmatprep.subr.mxu0 0.0
    %583 = vmatpush1.msra.mxu0 0.0
    %584 = vmatprep.subr.mxu0 0.0
    %585 = vmatpush1.msra.mxu0 0.0
    %586 = vmatprep.subr.mxu0 0.0
    %587 = vmatpush1.msra.mxu0 0.0
    %588 = vmatprep.mubr.f32.mxu0 0.0
    %589 = vmatmul.mubr.f32.gmra.mrb[0].mxu0 %v519
    %v590 = vpop.f32.mrb[0].mxu0
    %v591 = vadd.f32 %v515, %v590
    %v592 = vpop.f32.mrb[0].mxu0
    %593 = vdwg.mxu0
    %v594 = vld [vmem:[#allocation4 + $0x4] sm:$0xf]
    %v595 = vld [vmem:[%s4 + $0x4] sm:$0xf]
    %v597 = vsel %vm444, %v595, 0
    %599 = vmatprep.subr.mxu0 0.0
    %600 = vmatpush1.msra.mxu0 %v597
    %601 = vmatprep.subr.mxu0 0.0
    %602 = vmatpush1.msra.mxu0 0.0
    %603 = vmatprep.subr.mxu0 0.0
    %604 = vmatpush1.msra.mxu0 0.0
    %605 = vmatprep.subr.mxu0 0.0
    %606 = vmatpush1.msra.mxu0 0.0
    %607 = vmatprep.subr.mxu0 0.0
    %608 = vmatpush1.msra.mxu0 0.0
    %609 = vmatprep.subr.mxu0 0.0
    %610 = vmatpush1.msra.mxu0 0.0
    %611 = vmatprep.subr.mxu0 0.0
    %612 = vmatpush1.msra.mxu0 0.0
    %613 = vmatprep.subr.mxu0 0.0
    %614 = vmatpush1.msra.mxu0 0.0
    %615 = vmatprep.subr.mxu0 0.0
    %616 = vmatpush1.msra.mxu0 0.0
    %617 = vmatprep.subr.mxu0 0.0
    %618 = vmatpush1.msra.mxu0 0.0
    %619 = vmatprep.subr.mxu0 0.0
    %620 = vmatpush1.msra.mxu0 0.0
    %621 = vmatprep.subr.mxu0 0.0
    %622 = vmatpush1.msra.mxu0 0.0
    %623 = vmatprep.subr.mxu0 0.0
    %624 = vmatpush1.msra.mxu0 0.0
    %625 = vmatprep.subr.mxu0 0.0
    %626 = vmatpush1.msra.mxu0 0.0
    %627 = vmatprep.subr.mxu0 0.0
    %628 = vmatpush1.msra.mxu0 0.0
    %629 = vmatprep.subr.mxu0 0.0
    %630 = vmatpush1.msra.mxu0 0.0
    %631 = vmatprep.subr.mxu0 0.0
    %632 = vmatpush1.msra.mxu0 0.0
    %633 = vmatprep.subr.mxu0 0.0
    %634 = vmatpush1.msra.mxu0 0.0
    %635 = vmatprep.subr.mxu0 0.0
    %636 = vmatpush1.msra.mxu0 0.0
    %637 = vmatprep.subr.mxu0 0.0
    %638 = vmatpush1.msra.mxu0 0.0
    %639 = vmatprep.subr.mxu0 0.0
    %640 = vmatpush1.msra.mxu0 0.0
    %641 = vmatprep.subr.mxu0 0.0
    %642 = vmatpush1.msra.mxu0 0.0
    %643 = vmatprep.subr.mxu0 0.0
    %644 = vmatpush1.msra.mxu0 0.0
    %645 = vmatprep.subr.mxu0 0.0
    %646 = vmatpush1.msra.mxu0 0.0
    %647 = vmatprep.subr.mxu0 0.0
    %648 = vmatpush1.msra.mxu0 0.0
    %649 = vmatprep.subr.mxu0 0.0
    %650 = vmatpush1.msra.mxu0 0.0
    %651 = vmatprep.subr.mxu0 0.0
    %652 = vmatpush1.msra.mxu0 0.0
    %653 = vmatprep.subr.mxu0 0.0
    %654 = vmatpush1.msra.mxu0 0.0
    %655 = vmatprep.subr.mxu0 0.0
    %656 = vmatpush1.msra.mxu0 0.0
    %657 = vmatprep.subr.mxu0 0.0
    %658 = vmatpush1.msra.mxu0 0.0
    %659 = vmatprep.subr.mxu0 0.0
    %660 = vmatpush1.msra.mxu0 0.0
    %661 = vmatprep.subr.mxu0 0.0
    %662 = vmatpush1.msra.mxu0 0.0
    %663 = vmatprep.mubr.f32.mxu0 0.0
    %664 = vmatmul.mubr.f32.gmra.mrb[0].mxu0 %v442
    %v665 = vpop.f32.mrb[0].mxu0
    %v666 = vadd.f32 0.0, %v665
    %v667 = vpop.f32.mrb[0].mxu0
    %668 = vdwg.mxu0
    %v670 = vsel %vm444, %v594, 0
    %672 = vmatprep.subr.mxu0 0.0
    %673 = vmatpush1.msra.mxu0 %v670
    %674 = vmatprep.subr.mxu0 0.0
    %675 = vmatpush1.msra.mxu0 0.0
    %676 = vmatprep.subr.mxu0 0.0
    %677 = vmatpush1.msra.mxu0 0.0
    %678 = vmatprep.subr.mxu0 0.0
    %679 = vmatpush1.msra.mxu0 0.0
    %680 = vmatprep.subr.mxu0 0.0
    %681 = vmatpush1.msra.mxu0 0.0
    %682 = vmatprep.subr.mxu0 0.0
    %683 = vmatpush1.msra.mxu0 0.0
    %684 = vmatprep.subr.mxu0 0.0
    %685 = vmatpush1.msra.mxu0 0.0
    %686 = vmatprep.subr.mxu0 0.0
    %687 = vmatpush1.msra.mxu0 0.0
    %688 = vmatprep.subr.mxu0 0.0
    %689 = vmatpush1.msra.mxu0 0.0
    %690 = vmatprep.subr.mxu0 0.0
    %691 = vmatpush1.msra.mxu0 0.0
    %692 = vmatprep.subr.mxu0 0.0
    %693 = vmatpush1.msra.mxu0 0.0
    %694 = vmatprep.subr.mxu0 0.0
    %695 = vmatpush1.msra.mxu0 0.0
    %696 = vmatprep.subr.mxu0 0.0
    %697 = vmatpush1.msra.mxu0 0.0
    %698 = vmatprep.subr.mxu0 0.0
    %699 = vmatpush1.msra.mxu0 0.0
    %700 = vmatprep.subr.mxu0 0.0
    %701 = vmatpush1.msra.mxu0 0.0
    %702 = vmatprep.subr.mxu0 0.0
    %703 = vmatpush1.msra.mxu0 0.0
    %704 = vmatprep.subr.mxu0 0.0
    %705 = vmatpush1.msra.mxu0 0.0
    %706 = vmatprep.subr.mxu0 0.0
    %707 = vmatpush1.msra.mxu0 0.0
    %708 = vmatprep.subr.mxu0 0.0
    %709 = vmatpush1.msra.mxu0 0.0
    %710 = vmatprep.subr.mxu0 0.0
    %711 = vmatpush1.msra.mxu0 0.0
    %712 = vmatprep.subr.mxu0 0.0
    %713 = vmatpush1.msra.mxu0 0.0
    %714 = vmatprep.subr.mxu0 0.0
    %715 = vmatpush1.msra.mxu0 0.0
    %716 = vmatprep.subr.mxu0 0.0
    %717 = vmatpush1.msra.mxu0 0.0
    %718 = vmatprep.subr.mxu0 0.0
    %719 = vmatpush1.msra.mxu0 0.0
    %720 = vmatprep.subr.mxu0 0.0
    %721 = vmatpush1.msra.mxu0 0.0
    %722 = vmatprep.subr.mxu0 0.0
    %723 = vmatpush1.msra.mxu0 0.0
    %724 = vmatprep.subr.mxu0 0.0
    %725 = vmatpush1.msra.mxu0 0.0
    %726 = vmatprep.subr.mxu0 0.0
    %727 = vmatpush1.msra.mxu0 0.0
    %728 = vmatprep.subr.mxu0 0.0
    %729 = vmatpush1.msra.mxu0 0.0
    %730 = vmatprep.subr.mxu0 0.0
    %731 = vmatpush1.msra.mxu0 0.0
    %732 = vmatprep.subr.mxu0 0.0
    %733 = vmatpush1.msra.mxu0 0.0
    %734 = vmatprep.subr.mxu0 0.0
    %735 = vmatpush1.msra.mxu0 0.0
    %736 = vmatprep.mubr.f32.mxu0 0.0
    %737 = vmatmul.mubr.f32.gmra.mrb[0].mxu0 %v519
    %v738 = vpop.f32.mrb[0].mxu0
    %v739 = vadd.f32 %v666, %v738
    %v740 = vpop.f32.mrb[0].mxu0
    %741 = vdwg.mxu0
    %v742 = vmul.f32 %v591, %v739
    %v743 = vld [vmem:[#allocation4 + $0x8] sm:$0xf]
    %v744 = vld [vmem:[%s4 + $0x8] sm:$0xf]
    %v746 = vsel %vm444, %v744, 0
    %748 = vmatprep.subr.mxu0 0.0
    %749 = vmatpush1.msra.mxu0 %v746
    %750 = vmatprep.subr.mxu0 0.0
    %751 = vmatpush1.msra.mxu0 0.0
    %752 = vmatprep.subr.mxu0 0.0
    %753 = vmatpush1.msra.mxu0 0.0
    %754 = vmatprep.subr.mxu0 0.0
    %755 = vmatpush1.msra.mxu0 0.0
    %756 = vmatprep.subr.mxu0 0.0
    %757 = vmatpush1.msra.mxu0 0.0
    %758 = vmatprep.subr.mxu0 0.0
    %759 = vmatpush1.msra.mxu0 0.0
    %760 = vmatprep.subr.mxu0 0.0
    %761 = vmatpush1.msra.mxu0 0.0
    %762 = vmatprep.subr.mxu0 0.0
    %763 = vmatpush1.msra.mxu0 0.0
    %764 = vmatprep.subr.mxu0 0.0
    %765 = vmatpush1.msra.mxu0 0.0
    %766 = vmatprep.subr.mxu0 0.0
    %767 = vmatpush1.msra.mxu0 0.0
    %768 = vmatprep.subr.mxu0 0.0
    %769 = vmatpush1.msra.mxu0 0.0
    %770 = vmatprep.subr.mxu0 0.0
    %771 = vmatpush1.msra.mxu0 0.0
    %772 = vmatprep.subr.mxu0 0.0
    %773 = vmatpush1.msra.mxu0 0.0
    %774 = vmatprep.subr.mxu0 0.0
    %775 = vmatpush1.msra.mxu0 0.0
    %776 = vmatprep.subr.mxu0 0.0
    %777 = vmatpush1.msra.mxu0 0.0
    %778 = vmatprep.subr.mxu0 0.0
    %779 = vmatpush1.msra.mxu0 0.0
    %780 = vmatprep.subr.mxu0 0.0
    %781 = vmatpush1.msra.mxu0 0.0
    %782 = vmatprep.subr.mxu0 0.0
    %783 = vmatpush1.msra.mxu0 0.0
    %784 = vmatprep.subr.mxu0 0.0
    %785 = vmatpush1.msra.mxu0 0.0
    %786 = vmatprep.subr.mxu0 0.0
    %787 = vmatpush1.msra.mxu0 0.0
    %788 = vmatprep.subr.mxu0 0.0
    %789 = vmatpush1.msra.mxu0 0.0
    %790 = vmatprep.subr.mxu0 0.0
    %791 = vmatpush1.msra.mxu0 0.0
    %792 = vmatprep.subr.mxu0 0.0
    %793 = vmatpush1.msra.mxu0 0.0
    %794 = vmatprep.subr.mxu0 0.0
    %795 = vmatpush1.msra.mxu0 0.0
    %796 = vmatprep.subr.mxu0 0.0
    %797 = vmatpush1.msra.mxu0 0.0
    %798 = vmatprep.subr.mxu0 0.0
    %799 = vmatpush1.msra.mxu0 0.0
    %800 = vmatprep.subr.mxu0 0.0
    %801 = vmatpush1.msra.mxu0 0.0
    %802 = vmatprep.subr.mxu0 0.0
    %803 = vmatpush1.msra.mxu0 0.0
    %804 = vmatprep.subr.mxu0 0.0
    %805 = vmatpush1.msra.mxu0 0.0
    %806 = vmatprep.subr.mxu0 0.0
    %807 = vmatpush1.msra.mxu0 0.0
    %808 = vmatprep.subr.mxu0 0.0
    %809 = vmatpush1.msra.mxu0 0.0
    %810 = vmatprep.subr.mxu0 0.0
    %811 = vmatpush1.msra.mxu0 0.0
    %812 = vmatprep.mubr.f32.mxu0 0.0
    %813 = vmatmul.mubr.f32.gmra.mrb[0].mxu0 %v442
    %v814 = vpop.f32.mrb[0].mxu0
    %v815 = vadd.f32 0.0, %v814
    %v816 = vpop.f32.mrb[0].mxu0
    %817 = vdwg.mxu0
    %v819 = vsel %vm444, %v743, 0
    %821 = vmatprep.subr.mxu0 0.0
    %822 = vmatpush1.msra.mxu0 %v819
    %823 = vmatprep.subr.mxu0 0.0
    %824 = vmatpush1.msra.mxu0 0.0
    %825 = vmatprep.subr.mxu0 0.0
    %826 = vmatpush1.msra.mxu0 0.0
    %827 = vmatprep.subr.mxu0 0.0
    %828 = vmatpush1.msra.mxu0 0.0
    %829 = vmatprep.subr.mxu0 0.0
    %830 = vmatpush1.msra.mxu0 0.0
    %831 = vmatprep.subr.mxu0 0.0
    %832 = vmatpush1.msra.mxu0 0.0
    %833 = vmatprep.subr.mxu0 0.0
    %834 = vmatpush1.msra.mxu0 0.0
    %835 = vmatprep.subr.mxu0 0.0
    %836 = vmatpush1.msra.mxu0 0.0
    %837 = vmatprep.subr.mxu0 0.0
    %838 = vmatpush1.msra.mxu0 0.0
    %839 = vmatprep.subr.mxu0 0.0
    %840 = vmatpush1.msra.mxu0 0.0
    %841 = vmatprep.subr.mxu0 0.0
    %842 = vmatpush1.msra.mxu0 0.0
    %843 = vmatprep.subr.mxu0 0.0
    %844 = vmatpush1.msra.mxu0 0.0
    %845 = vmatprep.subr.mxu0 0.0
    %846 = vmatpush1.msra.mxu0 0.0
    %847 = vmatprep.subr.mxu0 0.0
    %848 = vmatpush1.msra.mxu0 0.0
    %849 = vmatprep.subr.mxu0 0.0
    %850 = vmatpush1.msra.mxu0 0.0
    %851 = vmatprep.subr.mxu0 0.0
    %852 = vmatpush1.msra.mxu0 0.0
    %853 = vmatprep.subr.mxu0 0.0
    %854 = vmatpush1.msra.mxu0 0.0
    %855 = vmatprep.subr.mxu0 0.0
    %856 = vmatpush1.msra.mxu0 0.0
    %857 = vmatprep.subr.mxu0 0.0
    %858 = vmatpush1.msra.mxu0 0.0
    %859 = vmatprep.subr.mxu0 0.0
    %860 = vmatpush1.msra.mxu0 0.0
    %861 = vmatprep.subr.mxu0 0.0
    %862 = vmatpush1.msra.mxu0 0.0
    %863 = vmatprep.subr.mxu0 0.0
    %864 = vmatpush1.msra.mxu0 0.0
    %865 = vmatprep.subr.mxu0 0.0
    %866 = vmatpush1.msra.mxu0 0.0
    %867 = vmatprep.subr.mxu0 0.0
    %868 = vmatpush1.msra.mxu0 0.0
    %869 = vmatprep.subr.mxu0 0.0
    %870 = vmatpush1.msra.mxu0 0.0
    %871 = vmatprep.subr.mxu0 0.0
    %872 = vmatpush1.msra.mxu0 0.0
    %873 = vmatprep.subr.mxu0 0.0
    %874 = vmatpush1.msra.mxu0 0.0
    %875 = vmatprep.subr.mxu0 0.0
    %876 = vmatpush1.msra.mxu0 0.0
    %877 = vmatprep.subr.mxu0 0.0
    %878 = vmatpush1.msra.mxu0 0.0
    %879 = vmatprep.subr.mxu0 0.0
    %880 = vmatpush1.msra.mxu0 0.0
    %881 = vmatprep.subr.mxu0 0.0
    %882 = vmatpush1.msra.mxu0 0.0
    %883 = vmatprep.subr.mxu0 0.0
    %884 = vmatpush1.msra.mxu0 0.0
    %885 = vmatprep.mubr.f32.mxu0 0.0
    %886 = vmatmul.mubr.f32.gmra.mrb[0].mxu0 %v519
    %v887 = vpop.f32.mrb[0].mxu0
    %v888 = vadd.f32 %v815, %v887
    %v889 = vpop.f32.mrb[0].mxu0
    %890 = vdwg.mxu0
    %v891 = vmul.f32 %v742, %v888
    %v892 = vld [vmem:[#allocation4 + $0xc] sm:$0xf]
    %v893 = vld [vmem:[%s4 + $0xc] sm:$0xf]
    %v895 = vsel %vm444, %v893, 0
    %897 = vmatprep.subr.mxu0 0.0
    %898 = vmatpush1.msra.mxu0 %v895
    %899 = vmatprep.subr.mxu0 0.0
    %900 = vmatpush1.msra.mxu0 0.0
    %901 = vmatprep.subr.mxu0 0.0
    %902 = vmatpush1.msra.mxu0 0.0
    %903 = vmatprep.subr.mxu0 0.0
    %904 = vmatpush1.msra.mxu0 0.0
    %905 = vmatprep.subr.mxu0 0.0
    %906 = vmatpush1.msra.mxu0 0.0
    %907 = vmatprep.subr.mxu0 0.0
    %908 = vmatpush1.msra.mxu0 0.0
    %909 = vmatprep.subr.mxu0 0.0
    %910 = vmatpush1.msra.mxu0 0.0
    %911 = vmatprep.subr.mxu0 0.0
    %912 = vmatpush1.msra.mxu0 0.0
    %913 = vmatprep.subr.mxu0 0.0
    %914 = vmatpush1.msra.mxu0 0.0
    %915 = vmatprep.subr.mxu0 0.0
    %916 = vmatpush1.msra.mxu0 0.0
    %917 = vmatprep.subr.mxu0 0.0
    %918 = vmatpush1.msra.mxu0 0.0
    %919 = vmatprep.subr.mxu0 0.0
    %920 = vmatpush1.msra.mxu0 0.0
    %921 = vmatprep.subr.mxu0 0.0
    %922 = vmatpush1.msra.mxu0 0.0
    %923 = vmatprep.subr.mxu0 0.0
    %924 = vmatpush1.msra.mxu0 0.0
    %925 = vmatprep.subr.mxu0 0.0
    %926 = vmatpush1.msra.mxu0 0.0
    %927 = vmatprep.subr.mxu0 0.0
    %928 = vmatpush1.msra.mxu0 0.0
    %929 = vmatprep.subr.mxu0 0.0
    %930 = vmatpush1.msra.mxu0 0.0
    %931 = vmatprep.subr.mxu0 0.0
    %932 = vmatpush1.msra.mxu0 0.0
    %933 = vmatprep.subr.mxu0 0.0
    %934 = vmatpush1.msra.mxu0 0.0
    %935 = vmatprep.subr.mxu0 0.0
    %936 = vmatpush1.msra.mxu0 0.0
    %937 = vmatprep.subr.mxu0 0.0
    %938 = vmatpush1.msra.mxu0 0.0
    %939 = vmatprep.subr.mxu0 0.0
    %940 = vmatpush1.msra.mxu0 0.0
    %941 = vmatprep.subr.mxu0 0.0
    %942 = vmatpush1.msra.mxu0 0.0
    %943 = vmatprep.subr.mxu0 0.0
    %944 = vmatpush1.msra.mxu0 0.0
    %945 = vmatprep.subr.mxu0 0.0
    %946 = vmatpush1.msra.mxu0 0.0
    %947 = vmatprep.subr.mxu0 0.0
    %948 = vmatpush1.msra.mxu0 0.0
    %949 = vmatprep.subr.mxu0 0.0
    %950 = vmatpush1.msra.mxu0 0.0
    %951 = vmatprep.subr.mxu0 0.0
    %952 = vmatpush1.msra.mxu0 0.0
    %953 = vmatprep.subr.mxu0 0.0
    %954 = vmatpush1.msra.mxu0 0.0
    %955 = vmatprep.subr.mxu0 0.0
    %956 = vmatpush1.msra.mxu0 0.0
    %957 = vmatprep.subr.mxu0 0.0
    %958 = vmatpush1.msra.mxu0 0.0
    %959 = vmatprep.subr.mxu0 0.0
    %960 = vmatpush1.msra.mxu0 0.0
    %961 = vmatprep.mubr.f32.mxu0 0.0
    %962 = vmatmul.mubr.f32.gmra.mrb[0].mxu0 %v442
    %v963 = vpop.f32.mrb[0].mxu0
    %v964 = vadd.f32 0.0, %v963
    %v965 = vpop.f32.mrb[0].mxu0
    %966 = vdwg.mxu0
    %v968 = vsel %vm444, %v892, 0
    %970 = vmatprep.subr.mxu0 0.0
    %971 = vmatpush1.msra.mxu0 %v968
    %972 = vmatprep.subr.mxu0 0.0
    %973 = vmatpush1.msra.mxu0 0.0
    %974 = vmatprep.subr.mxu0 0.0
    %975 = vmatpush1.msra.mxu0 0.0
    %976 = vmatprep.subr.mxu0 0.0
    %977 = vmatpush1.msra.mxu0 0.0
    %978 = vmatprep.subr.mxu0 0.0
    %979 = vmatpush1.msra.mxu0 0.0
    %980 = vmatprep.subr.mxu0 0.0
    %981 = vmatpush1.msra.mxu0 0.0
    %982 = vmatprep.subr.mxu0 0.0
    %983 = vmatpush1.msra.mxu0 0.0
    %984 = vmatprep.subr.mxu0 0.0
    %985 = vmatpush1.msra.mxu0 0.0
    %986 = vmatprep.subr.mxu0 0.0
    %987 = vmatpush1.msra.mxu0 0.0
    %988 = vmatprep.subr.mxu0 0.0
    %989 = vmatpush1.msra.mxu0 0.0
    %990 = vmatprep.subr.mxu0 0.0
    %991 = vmatpush1.msra.mxu0 0.0
    %992 = vmatprep.subr.mxu0 0.0
    %993 = vmatpush1.msra.mxu0 0.0
    %994 = vmatprep.subr.mxu0 0.0
    %995 = vmatpush1.msra.mxu0 0.0
    %996 = vmatprep.subr.mxu0 0.0
    %997 = vmatpush1.msra.mxu0 0.0
    %998 = vmatprep.subr.mxu0 0.0
    %999 = vmatpush1.msra.mxu0 0.0
    %1000 = vmatprep.subr.mxu0 0.0
    %1001 = vmatpush1.msra.mxu0 0.0
    %1002 = vmatprep.subr.mxu0 0.0
    %1003 = vmatpush1.msra.mxu0 0.0
    %1004 = vmatprep.subr.mxu0 0.0
    %1005 = vmatpush1.msra.mxu0 0.0
    %1006 = vmatprep.subr.mxu0 0.0
    %1007 = vmatpush1.msra.mxu0 0.0
    %1008 = vmatprep.subr.mxu0 0.0
    %1009 = vmatpush1.msra.mxu0 0.0
    %1010 = vmatprep.subr.mxu0 0.0
    %1011 = vmatpush1.msra.mxu0 0.0
    %1012 = vmatprep.subr.mxu0 0.0
    %1013 = vmatpush1.msra.mxu0 0.0
    %1014 = vmatprep.subr.mxu0 0.0
    %1015 = vmatpush1.msra.mxu0 0.0
    %1016 = vmatprep.subr.mxu0 0.0
    %1017 = vmatpush1.msra.mxu0 0.0
    %1018 = vmatprep.subr.mxu0 0.0
    %1019 = vmatpush1.msra.mxu0 0.0
    %1020 = vmatprep.subr.mxu0 0.0
    %1021 = vmatpush1.msra.mxu0 0.0
    %1022 = vmatprep.subr.mxu0 0.0
    %1023 = vmatpush1.msra.mxu0 0.0
    %1024 = vmatprep.subr.mxu0 0.0
    %1025 = vmatpush1.msra.mxu0 0.0
    %1026 = vmatprep.subr.mxu0 0.0
    %1027 = vmatpush1.msra.mxu0 0.0
    %1028 = vmatprep.subr.mxu0 0.0
    %1029 = vmatpush1.msra.mxu0 0.0
    %1030 = vmatprep.subr.mxu0 0.0
    %1031 = vmatpush1.msra.mxu0 0.0
    %1032 = vmatprep.subr.mxu0 0.0
    %1033 = vmatpush1.msra.mxu0 0.0
    %1034 = vmatprep.mubr.f32.mxu0 0.0
    %1035 = vmatmul.mubr.f32.gmra.mrb[0].mxu0 %v519
    %v1036 = vpop.f32.mrb[0].mxu0
    %v1037 = vadd.f32 %v964, %v1036
    %v1038 = vpop.f32.mrb[0].mxu0
    %1039 = vdwg.mxu0
    %v1040 = vmul.f32 %v891, %v1037
    %v1041 = vld [vmem:[#allocation6] sm:$0xff]
    %v1042 = vld [vmem:[#allocation6 + $0x8] sm:$0xff]
    %vm1043 = vcmask 130048
    %v1045 = vsel %vm1043, %v1040, 0
    %1047 = vmatprep.subr.mxu0 0.0
    %1048 = vmatpush1.msra.mxu0 %v1041
    %1049 = vmatprep.subr.mxu0 0.0
    %1050 = vmatpush1.msra.mxu0 %v1042
    %1051 = vmatprep.subr.mxu0 0.0
    %1052 = vmatpush1.msra.mxu0 0.0
    %1053 = vmatprep.subr.mxu0 0.0
    %1054 = vmatpush1.msra.mxu0 0.0
    %1055 = vmatprep.subr.mxu0 0.0
    %1056 = vmatpush1.msra.mxu0 0.0
    %1057 = vmatprep.subr.mxu0 0.0
    %1058 = vmatpush1.msra.mxu0 0.0
    %1059 = vmatprep.subr.mxu0 0.0
    %1060 = vmatpush1.msra.mxu0 0.0
    %1061 = vmatprep.subr.mxu0 0.0
    %1062 = vmatpush1.msra.mxu0 0.0
    %1063 = vmatprep.subr.mxu0 0.0
    %1064 = vmatpush1.msra.mxu0 0.0
    %1065 = vmatprep.subr.mxu0 0.0
    %1066 = vmatpush1.msra.mxu0 0.0
    %1067 = vmatprep.subr.mxu0 0.0
    %1068 = vmatpush1.msra.mxu0 0.0
    %1069 = vmatprep.subr.mxu0 0.0
    %1070 = vmatpush1.msra.mxu0 0.0
    %1071 = vmatprep.subr.mxu0 0.0
    %1072 = vmatpush1.msra.mxu0 0.0
    %1073 = vmatprep.subr.mxu0 0.0
    %1074 = vmatpush1.msra.mxu0 0.0
    %1075 = vmatprep.subr.mxu0 0.0
    %1076 = vmatpush1.msra.mxu0 0.0
    %1077 = vmatprep.subr.mxu0 0.0
    %1078 = vmatpush1.msra.mxu0 0.0
    %1079 = vmatprep.subr.mxu0 0.0
    %1080 = vmatpush1.msra.mxu0 0.0
    %1081 = vmatprep.subr.mxu0 0.0
    %1082 = vmatpush1.msra.mxu0 0.0
    %1083 = vmatprep.subr.mxu0 0.0
    %1084 = vmatpush1.msra.mxu0 0.0
    %1085 = vmatprep.subr.mxu0 0.0
    %1086 = vmatpush1.msra.mxu0 0.0
    %1087 = vmatprep.subr.mxu0 0.0
    %1088 = vmatpush1.msra.mxu0 0.0
    %1089 = vmatprep.subr.mxu0 0.0
    %1090 = vmatpush1.msra.mxu0 0.0
    %1091 = vmatprep.subr.mxu0 0.0
    %1092 = vmatpush1.msra.mxu0 0.0
    %1093 = vmatprep.subr.mxu0 0.0
    %1094 = vmatpush1.msra.mxu0 0.0
    %1095 = vmatprep.subr.mxu0 0.0
    %1096 = vmatpush1.msra.mxu0 0.0
    %1097 = vmatprep.subr.mxu0 0.0
    %1098 = vmatpush1.msra.mxu0 0.0
    %1099 = vmatprep.subr.mxu0 0.0
    %1100 = vmatpush1.msra.mxu0 0.0
    %1101 = vmatprep.subr.mxu0 0.0
    %1102 = vmatpush1.msra.mxu0 0.0
    %1103 = vmatprep.subr.mxu0 0.0
    %1104 = vmatpush1.msra.mxu0 0.0
    %1105 = vmatprep.subr.mxu0 0.0
    %1106 = vmatpush1.msra.mxu0 0.0
    %1107 = vmatprep.subr.mxu0 0.0
    %1108 = vmatpush1.msra.mxu0 0.0
    %1109 = vmatprep.subr.mxu0 0.0
    %1110 = vmatpush1.msra.mxu0 0.0
    %1111 = vmatprep.mubr.f32.mxu0 0.0
    %1112 = vmatmul.mubr.f32.gmra.mrb[0].mxu0 %v1045
    %v1113 = vpop.f32.mrb[0].mxu0
    %v1114 = vadd.f32 0.0, %v1113
    %v1115 = vpop.f32.mrb[0].mxu0
    %1116 = vdwg.mxu0
    %v1117 = vmul.f32 %v1114, %v1114
    %v1118 = vld [vmem:[%s6] sm:$0xff]
    %v1119 = vld [vmem:[%s6 + $0x8] sm:$0xff]
    %v1120 = vld [vmem:[%s7] sm:$0x1]
    %v1122 = vlaneseq
    %v1123 = vshrl.u32 %v1122, 7
    %v1124 = vsub.s32 0, %v1123
    %v1125 = vrot.slane %v1120, %v1124
    %v1128 = vsel %vm1043, %v1117, 0
    %1130 = vmatprep.subr.mxu0 0.0
    %1131 = vmatpush1.msra.mxu0 %v1118
    %1132 = vmatprep.subr.mxu0 0.0
    %1133 = vmatpush1.msra.mxu0 %v1119
    %1134 = vmatprep.subr.mxu0 0.0
    %1135 = vmatpush1.msra.mxu0 0.0
    %1136 = vmatprep.subr.mxu0 0.0
    %1137 = vmatpush1.msra.mxu0 0.0
    %1138 = vmatprep.subr.mxu0 0.0
    %1139 = vmatpush1.msra.mxu0 0.0
    %1140 = vmatprep.subr.mxu0 0.0
    %1141 = vmatpush1.msra.mxu0 0.0
    %1142 = vmatprep.subr.mxu0 0.0
    %1143 = vmatpush1.msra.mxu0 0.0
    %1144 = vmatprep.subr.mxu0 0.0
    %1145 = vmatpush1.msra.mxu0 0.0
    %1146 = vmatprep.subr.mxu0 0.0
    %1147 = vmatpush1.msra.mxu0 0.0
    %1148 = vmatprep.subr.mxu0 0.0
    %1149 = vmatpush1.msra.mxu0 0.0
    %1150 = vmatprep.subr.mxu0 0.0
    %1151 = vmatpush1.msra.mxu0 0.0
    %1152 = vmatprep.subr.mxu0 0.0
    %1153 = vmatpush1.msra.mxu0 0.0
    %1154 = vmatprep.subr.mxu0 0.0
    %1155 = vmatpush1.msra.mxu0 0.0
    %1156 = vmatprep.subr.mxu0 0.0
    %1157 = vmatpush1.msra.mxu0 0.0
    %1158 = vmatprep.subr.mxu0 0.0
    %1159 = vmatpush1.msra.mxu0 0.0
    %1160 = vmatprep.subr.mxu0 0.0
    %1161 = vmatpush1.msra.mxu0 0.0
    %1162 = vmatprep.subr.mxu0 0.0
    %1163 = vmatpush1.msra.mxu0 0.0
    %1164 = vmatprep.subr.mxu0 0.0
    %1165 = vmatpush1.msra.mxu0 0.0
    %1166 = vmatprep.subr.mxu0 0.0
    %1167 = vmatpush1.msra.mxu0 0.0
    %1168 = vmatprep.subr.mxu0 0.0
    %1169 = vmatpush1.msra.mxu0 0.0
    %1170 = vmatprep.subr.mxu0 0.0
    %1171 = vmatpush1.msra.mxu0 0.0
    %1172 = vmatprep.subr.mxu0 0.0
    %1173 = vmatpush1.msra.mxu0 0.0
    %1174 = vmatprep.subr.mxu0 0.0
    %1175 = vmatpush1.msra.mxu0 0.0
    %1176 = vmatprep.subr.mxu0 0.0
    %1177 = vmatpush1.msra.mxu0 0.0
    %1178 = vmatprep.subr.mxu0 0.0
    %1179 = vmatpush1.msra.mxu0 0.0
    %1180 = vmatprep.subr.mxu0 0.0
    %1181 = vmatpush1.msra.mxu0 0.0
    %1182 = vmatprep.subr.mxu0 0.0
    %1183 = vmatpush1.msra.mxu0 0.0
    %1184 = vmatprep.subr.mxu0 0.0
    %1185 = vmatpush1.msra.mxu0 0.0
    %1186 = vmatprep.subr.mxu0 0.0
    %1187 = vmatpush1.msra.mxu0 0.0
    %1188 = vmatprep.subr.mxu0 0.0
    %1189 = vmatpush1.msra.mxu0 0.0
    %1190 = vmatprep.subr.mxu0 0.0
    %1191 = vmatpush1.msra.mxu0 0.0
    %1192 = vmatprep.subr.mxu0 0.0
    %1193 = vmatpush1.msra.mxu0 0.0
    %1194 = vmatprep.mubr.f32.mxu0 0.0
    %1195 = vmatmul.mubr.f32.gmra.mrb[0].mxu0 %v1128
    %v1196 = vpop.f32.mrb[0].mxu0
    %v1197 = vadd.f32 %v1125, %v1196
    %v1198 = vpop.f32.mrb[0].mxu0
    %1199 = vdwg.mxu0
    %vm1200 = vcmask 15360
    %1201 = vst.msk [vmem:[%s8] sm:$0xff] %vm1200, %v1197
    // Predicated region
    $region46: #{tpu_custom_call.1} parent=1 // pred_check
      _
    $region47: #{tpu_custom_call.1} parent=1 // pred_check_branch
      %1203 = sbr.rel (0) target = $region49
    $region48: #{tpu_custom_call.1} parent=1 // pred_region
      _
    $region49: #{tpu_custom_call.1} parent=1 // pred_fallthru
      _
    // Predicated region
    $region50: #{tpu_custom_call.1} parent=1 // pred_check
      _
    $region51: #{tpu_custom_call.1} parent=1 // pred_check_branch
      %1205 = sbr.rel (0) target = $region53
    $region52: #{tpu_custom_call.1} parent=1 // pred_region
      _
    $region53: #{tpu_custom_call.1} parent=1 // pred_fallthru
      _
    %1206 = vsyncpa [#allocation3], 1
    %1207 = vsyncpa [#allocation5], 1

</llo_original>
